<compile_context>
chip_gen: v6e
topology: v6e:2x2x1
jax: 0.10.0
libtpu: 0.0.40
codegen_flags: <defaults>
</compile_context>

<pallas_src>
import jax
import jax.numpy as jnp
from jax.experimental import pallas as pl
from jax.experimental.pallas import tpu as pltpu


def _round_up(v, k):
    return (v + k - 1) // k * k


def upsampling_kernel(padjT_ref, x_ref, skips_ref, wm_ref, bm_ref,
                      wfc1_ref, wfc2_ref, bfc_ref, o_ref):
    # padjT_ref: (TM, n)     proj_adj.T rows for this m-tile (zero-padded rows)
    # x_ref    : (n, d)      current batch's x (batch dim squeezed)
    # skips_ref: (TM, e)     current batch / m-tile of skips
    # wm_ref   : (d, e)      linear_map.weight.T
    # bm_ref   : (1, e)      linear_map.bias (f32)
    # wfc1_ref : (e, e_out)  fc.weight[:, :e].T   (output dim zero-padded to e_out)
    # wfc2_ref : (e, e_out)  fc.weight[:, e:].T   (output dim zero-padded to e_out)
    # bfc_ref  : (1, e_out)  fc.bias (f32, zero-padded)
    # o_ref    : (TM, e_out) lane-dense output tile
    up = jnp.dot(padjT_ref[...], x_ref[...],
                 preferred_element_type=jnp.float32)                 # (TM, d)

    h = jnp.dot(up.astype(wm_ref.dtype), wm_ref[...],
                preferred_element_type=jnp.float32) + bm_ref[...]    # (TM, e)
    h = jnp.maximum(h, 0.0)                                          # relu

    out = (jnp.dot(h.astype(wfc1_ref.dtype), wfc1_ref[...],
                   preferred_element_type=jnp.float32)
           + jnp.dot(skips_ref[...], wfc2_ref[...],
                     preferred_element_type=jnp.float32)
           + bfc_ref[...])                                           # (TM, e_out)
    o_ref[...] = jnp.maximum(out, 0.0).astype(o_ref.dtype)           # relu


def upsampling_forward(x, skips, proj_adj, wm, bm, wfc, bfc, *,
                       compute_dtype=jnp.bfloat16, row_tile_cap=1024):
    """x: (b,n,d), skips: (b,m,e), proj_adj: (n,m),
       wm: (e,d) = linear_map.weight, bm: (e,) = linear_map.bias,
       wfc: (e,2e) = fc.weight, bfc: (e,) = fc.bias.
       compute_dtype=bfloat16 (default) halves HBM traffic; accumulation stays f32.
       Use compute_dtype=float32 for bit-tight comparisons against an f32 reference."""
    b, n, d = x.shape
    _, m, e = skips.shape
    assert proj_adj.shape == (n, m)
    assert wm.shape == (e, d) and bm.shape == (e,)
    assert wfc.shape == (e, 2 * e) and bfc.shape == (e,)

    LANE = 128
    cdt = jnp.dtype(compute_dtype)
    out_dtype = jnp.float32

    # Lane-dense output: pad only the *output* feature dim to 128 lanes (exact: relu of
    # zero weight columns + zero bias = 0); sliced off after the call.
    e_out = _round_up(e, LANE)

    # Row tile over m: as large as possible (HBM roofline), no forced multi-step split —
    # the batch grid axis already provides parallel steps for v7x's two TensorCores.
    TM = min(_round_up(row_tile_cap, 8), _round_up(m, 8))
    m_pad = _round_up(m, TM)
    grid = (b, m_pad // TM)

    # ---- operand prep (cast to compute_dtype BEFORE any pad; no lane padding of inputs) ----
    padjT = jnp.pad(proj_adj.T.astype(cdt), ((0, m_pad - m), (0, 0)))        # (m_pad, n)
    xc = x.astype(cdt)                                                       # (b, n, d)
    skc = jnp.pad(skips.astype(cdt), ((0, 0), (0, m_pad - m), (0, 0)))       # (b, m_pad, e)

    wm_t = wm.T.astype(cdt)                                                  # (d, e)
    wfc1_t = jnp.pad(wfc[:, :e].T.astype(cdt), ((0, 0), (0, e_out - e)))     # (e, e_out)
    wfc2_t = jnp.pad(wfc[:, e:].T.astype(cdt), ((0, 0), (0, e_out - e)))     # (e, e_out)
    bm2 = bm.reshape(1, e).astype(jnp.float32)                               # (1, e)
    bfc2 = jnp.pad(bfc.astype(jnp.float32), (0, e_out - e)).reshape(1, e_out)

    # advisory scheduler hint (actual element sizes, true flops)
    celem = cdt.itemsize
    oelem = jnp.dtype(out_dtype).itemsize
    flops = 2 * b * m * (n * d + d * e + 2 * e * e)
    bytes_accessed = (celem * (b * (m_pad * (n + e) + n * d)
                               + d * e + 2 * e * e_out)
                      + 4 * (e + e_out)
                      + oelem * b * m_pad * e_out)

    out = pl.pallas_call(
        upsampling_kernel,
        out_shape=jax.ShapeDtypeStruct((b, m_pad, e_out), out_dtype),
        grid_spec=pltpu.PrefetchScalarGridSpec(
            num_scalar_prefetch=0,
            grid=grid,
            in_specs=[
                pl.BlockSpec((TM, n), lambda bi, j: (j, 0)),            # proj_adj.T m-tile
                pl.BlockSpec((None, n, d), lambda bi, j: (bi, 0, 0)),   # x for this batch
                pl.BlockSpec((None, TM, e), lambda bi, j: (bi, j, 0)),  # skips tile
                pl.BlockSpec((d, e), lambda bi, j: (0, 0)),             # linear_map W^T
                pl.BlockSpec((1, e), lambda bi, j: (0, 0)),             # linear_map bias
                pl.BlockSpec((e, e_out), lambda bi, j: (0, 0)),         # fc W (h half)^T
                pl.BlockSpec((e, e_out), lambda bi, j: (0, 0)),         # fc W (skip half)^T
                pl.BlockSpec((1, e_out), lambda bi, j: (0, 0)),         # fc bias
            ],
            out_specs=pl.BlockSpec((None, TM, e_out), lambda bi, j: (bi, j, 0)),
        ),
        compiler_params=pltpu.CompilerParams(
            dimension_semantics=("parallel", "parallel"),
            vmem_limit_bytes=32 * 1024 * 1024),
        cost_estimate=pl.CostEstimate(flops=flops, transcendentals=0,
                                      bytes_accessed=bytes_accessed),
    )(padjT, xc, skc, wm_t, bm2, wfc1_t, wfc2_t, bfc2)

    return out[:, :m, :e].astype(x.dtype)


def reference_forward(x, skips, proj_adj, wm, bm, wfc, bfc):
    up = jnp.einsum("nm,bnd->bmd", proj_adj, x)                 # proj_adj.T @ x
    h = jax.nn.relu(jnp.einsum("bmd,ed->bme", up, wm) + bm)
    cat = jnp.concatenate([h, skips], axis=-1)
    out = jax.nn.relu(jnp.einsum("bmf,ef->bme", cat, wfc) + bfc)
    return out


if __name__ == "__main__":
    # small shapes consistent with the module
    b, n, m = 2, 8, 16
    input_dim, embed_dim = 32, 32

    key = jax.random.PRNGKey(0)
    kx, ks, kp, k1, k2, k3, k4 = jax.random.split(key, 7)

    x = jax.random.normal(kx, (b, n, input_dim), dtype=jnp.float32)
    skips = jax.random.normal(ks, (b, m, embed_dim), dtype=jnp.float32)
    # tree-like projection adjacency (n rows, m cols)
    proj_adj = (jax.random.uniform(kp, (n, m)) > 0.5).astype(jnp.float32)

    # deterministic parameters (shapes from the nn.Linear definitions)
    wm = 0.1 * jax.random.normal(k1, (embed_dim, input_dim), dtype=jnp.float32)       # linear_map.weight
    bm = 0.1 * jax.random.normal(k2, (embed_dim,), dtype=jnp.float32)                 # linear_map.bias
    wfc = 0.1 * jax.random.normal(k3, (embed_dim, 2 * embed_dim), dtype=jnp.float32)  # fc.weight
    bfc = 0.1 * jax.random.normal(k4, (embed_dim,), dtype=jnp.float32)                # fc.bias

    ref = reference_forward(x, skips, proj_adj, wm, bm, wfc, bfc)

    # exact f32 compute path — tight check against the reference
    out_f32 = jax.block_until_ready(
        upsampling_forward(x, skips, proj_adj, wm, bm, wfc, bfc,
                           compute_dtype=jnp.float32))
    assert out_f32.shape == (b, m, embed_dim)
    assert jnp.allclose(out_f32, ref, atol=1e-4, rtol=1e-4)

    # production default (bf16 activations/weights, f32 accumulation) — looser tolerance
    # because h is rounded to bf16 between the two linears.
    out_bf16 = jax.block_until_ready(
        upsampling_forward(x, skips, proj_adj, wm, bm, wfc, bfc))
    assert out_bf16.shape == (b, m, embed_dim)
    assert jnp.allclose(out_bf16, ref, atol=1e-1, rtol=1e-1)

    print("KERNEL_OK")
</pallas_src>

<mosaic_0001>
module attributes {stable_mosaic.version = 11 : i64} {
  func.func @upsampling_kernel(%arg0: i32, %arg1: i32, %arg2: memref<16x8xf32, #tpu.memory_space<vmem>>, %arg3: memref<1x8x32xf32, #tpu.memory_space<vmem>>, %arg4: memref<1x16x32xf32, #tpu.memory_space<vmem>>, %arg5: memref<32x32xf32, #tpu.memory_space<vmem>>, %arg6: memref<1x32xf32, #tpu.memory_space<vmem>>, %arg7: memref<32x128xf32, #tpu.memory_space<vmem>>, %arg8: memref<32x128xf32, #tpu.memory_space<vmem>>, %arg9: memref<1x128xf32, #tpu.memory_space<vmem>>, %arg10: memref<1x16x128xf32, #tpu.memory_space<vmem>>) attributes {dimension_semantics = [#tpu.dimension_semantics<parallel>, #tpu.dimension_semantics<parallel>], iteration_bounds = array<i64: 2, 1>, scalar_prefetch = 0 : i64, scratch_operands = 0 : i64, tpu.core_type = #tpu.core_type<tc>, window_params = [{transform_indices = @transform_0, window_bounds = array<i64: 16, 8>}, {transform_indices = @transform_1, window_bounds = array<i64: 1, 8, 32>}, {transform_indices = @transform_2, window_bounds = array<i64: 1, 16, 32>}, {pipeline_mode = #tpu.pipeline_mode<synchronous>, transform_indices = @transform_3, window_bounds = array<i64: 32, 32>}, {pipeline_mode = #tpu.pipeline_mode<synchronous>, transform_indices = @transform_4, window_bounds = array<i64: 1, 32>}, {pipeline_mode = #tpu.pipeline_mode<synchronous>, transform_indices = @transform_5, window_bounds = array<i64: 32, 128>}, {pipeline_mode = #tpu.pipeline_mode<synchronous>, transform_indices = @transform_6, window_bounds = array<i64: 32, 128>}, {pipeline_mode = #tpu.pipeline_mode<synchronous>, transform_indices = @transform_7, window_bounds = array<i64: 1, 128>}, {transform_indices = @transform_8, window_bounds = array<i64: 1, 16, 128>}]} {
    %c0 = arith.constant 0 : index
    %c0_0 = arith.constant 0 : index
    %0 = vector.load %arg2[%c0, %c0_0] : memref<16x8xf32, #tpu.memory_space<vmem>>, vector<16x8xf32>
    %c0_1 = arith.constant 0 : index
    %c0_2 = arith.constant 0 : index
    %c0_3 = arith.constant 0 : index
    %1 = vector.load %arg3[%c0_1, %c0_2, %c0_3] : memref<1x8x32xf32, #tpu.memory_space<vmem>>, vector<1x8x32xf32>
    %2 = vector.shape_cast %1 : vector<1x8x32xf32> to vector<8x32xf32>
    %cst = arith.constant dense<0.000000e+00> : vector<16x32xf32>
    %3 = tpu.matmul %0, %2, %cst {dimension_numbers = #tpu.dot_dimension_numbers<[1], [0], [0], [1], [0, 0, 1, 1], [], []>} : vector<16x8xf32>, vector<8x32xf32>, vector<16x32xf32> -> vector<16x32xf32>
    %c0_4 = arith.constant 0 : index
    %c0_5 = arith.constant 0 : index
    %4 = vector.load %arg5[%c0_4, %c0_5] : memref<32x32xf32, #tpu.memory_space<vmem>>, vector<32x32xf32>
    %cst_6 = arith.constant dense<0.000000e+00> : vector<16x32xf32>
    %5 = tpu.matmul %3, %4, %cst_6 {dimension_numbers = #tpu.dot_dimension_numbers<[1], [0], [0], [1], [0, 0, 1, 1], [], []>} : vector<16x32xf32>, vector<32x32xf32>, vector<16x32xf32> -> vector<16x32xf32>
    %c0_7 = arith.constant 0 : index
    %c0_8 = arith.constant 0 : index
    %6 = vector.load %arg6[%c0_7, %c0_8] : memref<1x32xf32, #tpu.memory_space<vmem>>, vector<1x32xf32>
    %7 = vector.broadcast %6 : vector<1x32xf32> to vector<16x32xf32>
    %8 = arith.addf %5, %7 : vector<16x32xf32>
    %cst_9 = arith.constant 0.000000e+00 : f32
    %9 = vector.broadcast %cst_9 : f32 to vector<16x32xf32>
    %10 = arith.maximumf %8, %9 : vector<16x32xf32>
    %c0_10 = arith.constant 0 : index
    %c0_11 = arith.constant 0 : index
    %11 = vector.load %arg7[%c0_10, %c0_11] : memref<32x128xf32, #tpu.memory_space<vmem>>, vector<32x128xf32>
    %cst_12 = arith.constant dense<0.000000e+00> : vector<16x128xf32>
    %12 = tpu.matmul %10, %11, %cst_12 {dimension_numbers = #tpu.dot_dimension_numbers<[1], [0], [0], [1], [0, 0, 1, 1], [], []>} : vector<16x32xf32>, vector<32x128xf32>, vector<16x128xf32> -> vector<16x128xf32>
    %c0_13 = arith.constant 0 : index
    %c0_14 = arith.constant 0 : index
    %c0_15 = arith.constant 0 : index
    %13 = vector.load %arg4[%c0_13, %c0_14, %c0_15] : memref<1x16x32xf32, #tpu.memory_space<vmem>>, vector<1x16x32xf32>
    %14 = vector.shape_cast %13 : vector<1x16x32xf32> to vector<16x32xf32>
    %c0_16 = arith.constant 0 : index
    %c0_17 = arith.constant 0 : index
    %15 = vector.load %arg8[%c0_16, %c0_17] : memref<32x128xf32, #tpu.memory_space<vmem>>, vector<32x128xf32>
    %cst_18 = arith.constant dense<0.000000e+00> : vector<16x128xf32>
    %16 = tpu.matmul %14, %15, %cst_18 {dimension_numbers = #tpu.dot_dimension_numbers<[1], [0], [0], [1], [0, 0, 1, 1], [], []>} : vector<16x32xf32>, vector<32x128xf32>, vector<16x128xf32> -> vector<16x128xf32>
    %17 = arith.addf %12, %16 : vector<16x128xf32>
    %c0_19 = arith.constant 0 : index
    %c0_20 = arith.constant 0 : index
    %18 = vector.load %arg9[%c0_19, %c0_20] : memref<1x128xf32, #tpu.memory_space<vmem>>, vector<1x128xf32>
    %19 = vector.broadcast %18 : vector<1x128xf32> to vector<16x128xf32>
    %20 = arith.addf %17, %19 : vector<16x128xf32>
    %cst_21 = arith.constant 0.000000e+00 : f32
    %21 = vector.broadcast %cst_21 : f32 to vector<16x128xf32>
    %22 = arith.maximumf %20, %21 : vector<16x128xf32>
    %c0_22 = arith.constant 0 : index
    %c0_23 = arith.constant 0 : index
    %c0_24 = arith.constant 0 : index
    %23 = vector.load %arg10[%c0_22, %c0_23, %c0_24] : memref<1x16x128xf32, #tpu.memory_space<vmem>>, vector<1x16x128xf32>
    %24 = vector.shape_cast %23 : vector<1x16x128xf32> to vector<16x128xf32>
    %25 = vector.shape_cast %22 : vector<16x128xf32> to vector<1x16x128xf32>
    tpu.vector_store %arg10[%c0_22, %c0_23, %c0_24], %25 {strides = array<i32>} : memref<1x16x128xf32, #tpu.memory_space<vmem>>, vector<1x16x128xf32>,
    return
  }
  func.func @transform_0(%arg0: i32, %arg1: i32) -> (i32, i32) {
    %c0_i32 = arith.constant 0 : i32
    %c0_i32_0 = arith.constant 0 : i32
    return %arg1, %c0_i32 : i32, i32
  }
  func.func @transform_1(%arg0: i32, %arg1: i32) -> (i32, i32, i32) {
    %c0_i32 = arith.constant 0 : i32
    %c0_i32_0 = arith.constant 0 : i32
    %c0_i32_1 = arith.constant 0 : i32
    return %arg0, %c0_i32, %c0_i32_0 : i32, i32, i32
  }
  func.func @transform_2(%arg0: i32, %arg1: i32) -> (i32, i32, i32) {
    %c0_i32 = arith.constant 0 : i32
    %c0_i32_0 = arith.constant 0 : i32
    return %arg0, %arg1, %c0_i32 : i32, i32, i32
  }
  func.func @transform_3(%arg0: i32, %arg1: i32) -> (i32, i32) {
    %c0_i32 = arith.constant 0 : i32
    %c0_i32_0 = arith.constant 0 : i32
    %c0_i32_1 = arith.constant 0 : i32
    return %c0_i32, %c0_i32_0 : i32, i32
  }
  func.func @transform_4(%arg0: i32, %arg1: i32) -> (i32, i32) {
    %c0_i32 = arith.constant 0 : i32
    %c0_i32_0 = arith.constant 0 : i32
    %c0_i32_1 = arith.constant 0 : i32
    return %c0_i32, %c0_i32_0 : i32, i32
  }
  func.func @transform_5(%arg0: i32, %arg1: i32) -> (i32, i32) {
    %c0_i32 = arith.constant 0 : i32
    %c0_i32_0 = arith.constant 0 : i32
    %c0_i32_1 = arith.constant 0 : i32
    return %c0_i32, %c0_i32_0 : i32, i32
  }
  func.func @transform_6(%arg0: i32, %arg1: i32) -> (i32, i32) {
    %c0_i32 = arith.constant 0 : i32
    %c0_i32_0 = arith.constant 0 : i32
    %c0_i32_1 = arith.constant 0 : i32
    return %c0_i32, %c0_i32_0 : i32, i32
  }
  func.func @transform_7(%arg0: i32, %arg1: i32) -> (i32, i32) {
    %c0_i32 = arith.constant 0 : i32
    %c0_i32_0 = arith.constant 0 : i32
    %c0_i32_1 = arith.constant 0 : i32
    return %c0_i32, %c0_i32_0 : i32, i32
  }
  func.func @transform_8(%arg0: i32, %arg1: i32) -> (i32, i32, i32) {
    %c0_i32 = arith.constant 0 : i32
    %c0_i32_0 = arith.constant 0 : i32
    return %arg0, %arg1, %c0_i32 : i32, i32, i32
  }
}

</mosaic_0001>

<llo_original>
// kernel: tpu_custom_call.1
$region0: #{tpu_custom_call.1}
  #allocation0 [shape = 'u32[]', space=smem, size = 0x4, offset = 0x4, fixed_abs, tag = 'smem constant byte address 0x4 - core index']
  #allocation1 [shape = 'u32[144,128]{1,0:T(1,128)}', space=vmem, size = 0x12000, scoped, tag = 'internal scratch']
  %s0 = inlined_call_operand.vmem [shape: f32[16,8], index: 0, kind: input, shape index: {}]
  %s1 = inlined_call_operand.hbm [shape: f32[2,8,32], index: 1, kind: input, shape index: {}]
  %s2 = inlined_call_operand.hbm [shape: f32[2,16,32], index: 2, kind: input, shape index: {}]
  %s3 = inlined_call_operand.hbm [shape: f32[32,32], index: 3, kind: input, shape index: {}]
  %s4 = inlined_call_operand.vmem [shape: f32[1,32], index: 4, kind: input, shape index: {}]
  %s5 = inlined_call_operand.vmem [shape: f32[32,128], index: 5, kind: input, shape index: {}]
  %s6 = inlined_call_operand.hbm [shape: f32[32,128], index: 6, kind: input, shape index: {}]
  %s7 = inlined_call_operand.vmem [shape: f32[1,128], index: 7, kind: input, shape index: {}]
  %s8 = inlined_call_operand.hbm [shape: f32[2,16,128], index: 8, kind: output, shape index: {}]
  %s9 = sld [smem:[#allocation0]]
  $region81: #{tpu_custom_call.1} parent=0
    _
  %s11 = ssub.s32 1, %s9
  %s12 = scalar_select 0, %s11, %s9
  $region1: #{tpu_custom_call.1} parent=0
    #allocation2 [shape = 'u8[8192]{0}', space=vmem, size = 0x2000, scoped, tag = 'input window, operand 1']
    #allocation3 [shape = 's32[2]{0}', space=sflag, size = 0x8, scoped, tag = 'scoped memory for tpu_custom_call.1']
    #allocation4 [shape = 's32[2]{0}', space=sflag, size = 0x8, scoped, tag = 'scoped memory for tpu_custom_call.1']
    #allocation5 [shape = 'u8[16384]{0}', space=vmem, size = 0x4000, scoped, tag = 'input window, operand 2']
    #allocation6 [shape = 's32[2]{0}', space=sflag, size = 0x8, scoped, tag = 'scoped memory for tpu_custom_call.1']
    #allocation7 [shape = 'u8[16384]{0}', space=vmem, size = 0x4000, scoped, tag = 'input window, operand 3, single buffered']
    #allocation8 [shape = 'u8[16384]{0}', space=vmem, size = 0x4000, scoped, tag = 'input window, operand 6, single buffered']
    #allocation9 [shape = 's32[1]{0}', space=sflag, size = 0x4, scoped, tag = 'scoped memory for tpu_custom_call.1']
    #allocation10 [shape = 'u8[16384]{0}', space=vmem, size = 0x4000, scoped, tag = 'output window, operand 0']
    %13 = vsyncpa [#allocation3], 0
    %s14 = scalar_lea.sflag [#allocation3], 1
    %15 = vsyncpa %s14, 0
    %16 = vsyncpa [#allocation6], 0
    %s17 = scalar_lea.sflag [#allocation6], 1
    %18 = vsyncpa %s17, 0
    %19 = vsyncpa [#allocation9], 0
    %20 = vsyncpa [#allocation4], 0
    %s21 = scalar_lea.sflag [#allocation4], 1
    %22 = vsyncpa %s21, 0
    loop: start=0, step=1, limit=4
    $region2: #{tpu_custom_call.1} parent=1 // loop_pre_header
      _
    $region3: #{tpu_custom_call.1} parent=1 // loop_header
      %s24 = sphi 0, %s28
      %p25 = scmp.ge.s32.totalorder %s24, 4
      %s31 = sphi 0, %s43
      %s32 = sphi 0, %s39
      %s33 = sphi 0, %s31
      %s34 = sphi 0, %s32
      %s35 = sphi 0, %s33
      %s36 = sphi 0, %s34
      %s46 = sphi 0, %s48
      %s49 = sphi 0, %s46
      %s50 = sphi 0, %s49
      %s66 = sphi 0, %s50
      %s72 = sphi 0, %s74
      %s75 = sphi 0, %s72
      %s76 = sphi 0, %s75
      %s92 = sphi 0, %s76
      %s100 = sphi 0, %s102
      %s103 = sphi 0, %s100
      %s104 = sphi 0, %s103
      %s120 = sphi 0, %s104
      %s124 = sphi 0, %s124
      %s126 = sphi 0, %s124
      %s127 = sphi 0, %s126
      %s141 = sphi 0, %s127
      %s145 = sphi 0, %s145
      %s147 = sphi 0, %s145
      %s148 = sphi 0, %s147
      %s162 = sphi 0, %s148
      %s166 = sphi 0, %s166
      %s168 = sphi 0, %s166
      %s169 = sphi 0, %s168
      %s183 = sphi 0, %s169
      %s187 = sphi 0, %s187
      %s189 = sphi 0, %s187
      %s190 = sphi 0, %s189
      %s204 = sphi 0, %s190
      %s208 = sphi 0, %s208
      %s210 = sphi 0, %s208
      %s211 = sphi 0, %s210
      %s225 = sphi 0, %s211
      %s233 = sphi 0, %s235
      %s236 = sphi 0, %s233
      %s237 = sphi 0, %s236
      %s253 = sphi 0, %s237
    $region4: #{tpu_custom_call.1} parent=1 // loop_header_branch
      %27 = sbr.rel (%p25) target = $region8
    $region5: #{tpu_custom_call.1} parent=1 // loop_body
      %s29 = ssub.s32 %s24, 1
      %s30 = ssub.s32 %s24, 2
      %s37 = sadd.s32 1, %s32
      %p38 = scmp.ge.s32.totalorder %s37, 1
      %s39 = scalar_select %p38, 0, %s37
      %s40 = sadd.s32 1, %s31
      %s41 = scalar_select %p38, %s40, %s31
      %p42 = scmp.ge.s32.totalorder %s41, 2
      %s43 = scalar_select %p42, 0, %s41
      %s44 = ssub.s32 %s32, %s39
      %p45 = scmp.eq.s32.totalorder %s44, 0
      %s47 = sadd.s32 %s46, 1
      %s48 = scalar_select %p45, %s46, %s47
      %p51 = pneg %p45
      %p52 = scmp.eq.s32.totalorder %s24, 1
      %p53 = por %p51, %p52
      %p54 = scmp.ne.s32.totalorder %s46, %s49
      %p55 = scmp.eq.s32.totalorder %s24, 0
      %p56 = por %p54, %p55
      %p57 = scmp.ne.s32.totalorder %s46, %s49
      %p58 = scmp.eq.s32.totalorder %s29, 1
      %p59 = por %p57, %p58
      %p60 = scmp.ne.s32.totalorder %s49, %s50
      %p61 = scmp.eq.s32.totalorder %s29, 0
      %p62 = por %p60, %p61
      %p63 = scmp.ne.s32.totalorder %s49, %s50
      %p64 = scmp.eq.s32.totalorder %s30, 1
      %p65 = por %p63, %p64
      %p67 = scmp.ne.s32.totalorder %s50, %s66
      %p68 = scmp.eq.s32.totalorder %s30, 0
      %p69 = por %p67, %p68
      %s70 = ssub.s32 %s31, %s43
      %p71 = scmp.eq.s32.totalorder %s70, 0
      %s73 = sadd.s32 %s72, 1
      %s74 = scalar_select %p71, %s72, %s73
      %p77 = pneg %p71
      %p78 = scmp.eq.s32.totalorder %s24, 1
      %p79 = por %p77, %p78
      %p80 = scmp.ne.s32.totalorder %s72, %s75
      %p81 = scmp.eq.s32.totalorder %s24, 0
      %p82 = por %p80, %p81
      %p83 = scmp.ne.s32.totalorder %s72, %s75
      %p84 = scmp.eq.s32.totalorder %s29, 1
      %p85 = por %p83, %p84
      %p86 = scmp.ne.s32.totalorder %s75, %s76
      %p87 = scmp.eq.s32.totalorder %s29, 0
      %p88 = por %p86, %p87
      %p89 = scmp.ne.s32.totalorder %s75, %s76
      %p90 = scmp.eq.s32.totalorder %s30, 1
      %p91 = por %p89, %p90
      %p93 = scmp.ne.s32.totalorder %s76, %s92
      %p94 = scmp.eq.s32.totalorder %s30, 0
      %p95 = por %p93, %p94
      %s96 = ssub.s32 %s31, %s43
      %s97 = ssub.s32 %s32, %s39
      %s98 = sor.u32 %s96, %s97
      %p99 = scmp.eq.s32.totalorder %s98, 0
      %s101 = sadd.s32 %s100, 1
      %s102 = scalar_select %p99, %s100, %s101
      %p105 = pneg %p99
      %p106 = scmp.eq.s32.totalorder %s24, 1
      %p107 = por %p105, %p106
      %p108 = scmp.ne.s32.totalorder %s100, %s103
      %p109 = scmp.eq.s32.totalorder %s24, 0
      %p110 = por %p108, %p109
      %p111 = scmp.ne.s32.totalorder %s100, %s103
      %p112 = scmp.eq.s32.totalorder %s29, 1
      %p113 = por %p111, %p112
      %p114 = scmp.ne.s32.totalorder %s103, %s104
      %p115 = scmp.eq.s32.totalorder %s29, 0
      %p116 = por %p114, %p115
      %p117 = scmp.ne.s32.totalorder %s103, %s104
      %p118 = scmp.eq.s32.totalorder %s30, 1
      %p119 = por %p117, %p118
      %p121 = scmp.ne.s32.totalorder %s104, %s120
      %p122 = scmp.eq.s32.totalorder %s30, 0
      %p123 = por %p121, %p122
      %s125 = sadd.s32 %s124, 1
      %p128 = scmp.eq.s32.totalorder %s24, 1
      %p129 = scmp.ne.s32.totalorder %s124, %s126
      %p130 = scmp.eq.s32.totalorder %s24, 0
      %p131 = por %p129, %p130
      %p132 = scmp.ne.s32.totalorder %s124, %s126
      %p133 = scmp.eq.s32.totalorder %s29, 1
      %p134 = por %p132, %p133
      %p135 = scmp.ne.s32.totalorder %s126, %s127
      %p136 = scmp.eq.s32.totalorder %s29, 0
      %p137 = por %p135, %p136
      %p138 = scmp.ne.s32.totalorder %s126, %s127
      %p139 = scmp.eq.s32.totalorder %s30, 1
      %p140 = por %p138, %p139
      %p142 = scmp.ne.s32.totalorder %s127, %s141
      %p143 = scmp.eq.s32.totalorder %s30, 0
      %p144 = por %p142, %p143
      %s146 = sadd.s32 %s145, 1
      %p149 = scmp.eq.s32.totalorder %s24, 1
      %p150 = scmp.ne.s32.totalorder %s145, %s147
      %p151 = scmp.eq.s32.totalorder %s24, 0
      %p152 = por %p150, %p151
      %p153 = scmp.ne.s32.totalorder %s145, %s147
      %p154 = scmp.eq.s32.totalorder %s29, 1
      %p155 = por %p153, %p154
      %p156 = scmp.ne.s32.totalorder %s147, %s148
      %p157 = scmp.eq.s32.totalorder %s29, 0
      %p158 = por %p156, %p157
      %p159 = scmp.ne.s32.totalorder %s147, %s148
      %p160 = scmp.eq.s32.totalorder %s30, 1
      %p161 = por %p159, %p160
      %p163 = scmp.ne.s32.totalorder %s148, %s162
      %p164 = scmp.eq.s32.totalorder %s30, 0
      %p165 = por %p163, %p164
      %s167 = sadd.s32 %s166, 1
      %p170 = scmp.eq.s32.totalorder %s24, 1
      %p171 = scmp.ne.s32.totalorder %s166, %s168
      %p172 = scmp.eq.s32.totalorder %s24, 0
      %p173 = por %p171, %p172
      %p174 = scmp.ne.s32.totalorder %s166, %s168
      %p175 = scmp.eq.s32.totalorder %s29, 1
      %p176 = por %p174, %p175
      %p177 = scmp.ne.s32.totalorder %s168, %s169
      %p178 = scmp.eq.s32.totalorder %s29, 0
      %p179 = por %p177, %p178
      %p180 = scmp.ne.s32.totalorder %s168, %s169
      %p181 = scmp.eq.s32.totalorder %s30, 1
      %p182 = por %p180, %p181
      %p184 = scmp.ne.s32.totalorder %s169, %s183
      %p185 = scmp.eq.s32.totalorder %s30, 0
      %p186 = por %p184, %p185
      %s188 = sadd.s32 %s187, 1
      %p191 = scmp.eq.s32.totalorder %s24, 1
      %p192 = scmp.ne.s32.totalorder %s187, %s189
      %p193 = scmp.eq.s32.totalorder %s24, 0
      %p194 = por %p192, %p193
      %p195 = scmp.ne.s32.totalorder %s187, %s189
      %p196 = scmp.eq.s32.totalorder %s29, 1
      %p197 = por %p195, %p196
      %p198 = scmp.ne.s32.totalorder %s189, %s190
      %p199 = scmp.eq.s32.totalorder %s29, 0
      %p200 = por %p198, %p199
      %p201 = scmp.ne.s32.totalorder %s189, %s190
      %p202 = scmp.eq.s32.totalorder %s30, 1
      %p203 = por %p201, %p202
      %p205 = scmp.ne.s32.totalorder %s190, %s204
      %p206 = scmp.eq.s32.totalorder %s30, 0
      %p207 = por %p205, %p206
      %s209 = sadd.s32 %s208, 1
      %p212 = scmp.eq.s32.totalorder %s24, 1
      %p213 = scmp.ne.s32.totalorder %s208, %s210
      %p214 = scmp.eq.s32.totalorder %s24, 0
      %p215 = por %p213, %p214
      %p216 = scmp.ne.s32.totalorder %s208, %s210
      %p217 = scmp.eq.s32.totalorder %s29, 1
      %p218 = por %p216, %p217
      %p219 = scmp.ne.s32.totalorder %s210, %s211
      %p220 = scmp.eq.s32.totalorder %s29, 0
      %p221 = por %p219, %p220
      %p222 = scmp.ne.s32.totalorder %s210, %s211
      %p223 = scmp.eq.s32.totalorder %s30, 1
      %p224 = por %p222, %p223
      %p226 = scmp.ne.s32.totalorder %s211, %s225
      %p227 = scmp.eq.s32.totalorder %s30, 0
      %p228 = por %p226, %p227
      %s229 = ssub.s32 %s31, %s43
      %s230 = ssub.s32 %s32, %s39
      %s231 = sor.u32 %s229, %s230
      %p232 = scmp.eq.s32.totalorder %s231, 0
      %s234 = sadd.s32 %s233, 1
      %s235 = scalar_select %p232, %s233, %s234
      %p238 = pneg %p232
      %p239 = scmp.eq.s32.totalorder %s24, 1
      %p240 = por %p238, %p239
      %p241 = scmp.ne.s32.totalorder %s233, %s236
      %p242 = scmp.eq.s32.totalorder %s24, 0
      %p243 = por %p241, %p242
      %p244 = scmp.ne.s32.totalorder %s233, %s236
      %p245 = scmp.eq.s32.totalorder %s29, 1
      %p246 = por %p244, %p245
      %p247 = scmp.ne.s32.totalorder %s236, %s237
      %p248 = scmp.eq.s32.totalorder %s29, 0
      %p249 = por %p247, %p248
      %p250 = scmp.ne.s32.totalorder %s236, %s237
      %p251 = scmp.eq.s32.totalorder %s30, 1
      %p252 = por %p250, %p251
      %p254 = scmp.ne.s32.totalorder %s237, %s253
      %p255 = scmp.eq.s32.totalorder %s30, 0
      %p256 = por %p254, %p255
      %p257 = scmp.le.s32.totalorder 1, %s24
      %p258 = scmp.lt.s32.totalorder %s24, 3
      %p259 = pnand %p257, %p258
      %p260 = pneg %p259
      // Predicated region
      $region9: #{tpu_custom_call.1} parent=5 // pred_check
        _
      $region10: #{tpu_custom_call.1} parent=5 // pred_check_branch
        %262 = sbr.rel (%p259) target = $region12
      $region11: #{tpu_custom_call.1} parent=5 // pred_region
        %s263 = ssub.s32 %s24, 1
        // Predicated region
        $region13: #{tpu_custom_call.1} parent=11 // pred_check
          %p264 = pneg %p62
        $region14: #{tpu_custom_call.1} parent=11 // pred_check_branch
          %266 = sbr.rel (%p264) target = $region16
        $region15: #{tpu_custom_call.1} parent=11 // pred_region
          %s267 = smul.u32 2, %s34
          %p268 = scmp.lt.s32.totalorder %s267, 1
          %s269 = scalar_select %p268, %s267, 1
          %s270 = smul.addr %s269, 8
          %s271 = scalar_lea.vmem %s0, %s270
          %s272 = smul.u32 2, %s34
        $region16: #{tpu_custom_call.1} parent=11 // pred_fallthru
          _
        // Predicated region
        $region17: #{tpu_custom_call.1} parent=11 // pred_check
          %p273 = pneg %p137
        $region18: #{tpu_custom_call.1} parent=11 // pred_check_branch
          %275 = sbr.rel (%p273) target = $region20
        $region19: #{tpu_custom_call.1} parent=11 // pred_region
          %s277 = ssub.s32 512, 512
          %278 = vsyncadd [#allocation6], %s277
          %s279 = sshll.u32 [#allocation7], 4
          %s280 = int_to_ptr.vmem [resolvable:$true] %s279
          %285 = dma.hbm_to_vmem [thread:$0]  %s3, 512, %s280, [#allocation6], 128, 128, 8
        $region20: #{tpu_custom_call.1} parent=11 // pred_fallthru
          _
        // Predicated region
        $region21: #{tpu_custom_call.1} parent=11 // pred_check
          %p286 = pneg %p158
        $region22: #{tpu_custom_call.1} parent=11 // pred_check_branch
          %288 = sbr.rel (%p286) target = $region24
        $region23: #{tpu_custom_call.1} parent=11 // pred_region
          _
        $region24: #{tpu_custom_call.1} parent=11 // pred_fallthru
          _
        // Predicated region
        $region25: #{tpu_custom_call.1} parent=11 // pred_check
          %p289 = pneg %p179
        $region26: #{tpu_custom_call.1} parent=11 // pred_check_branch
          %291 = sbr.rel (%p289) target = $region28
        $region27: #{tpu_custom_call.1} parent=11 // pred_region
          _
        $region28: #{tpu_custom_call.1} parent=11 // pred_fallthru
          _
        // Predicated region
        $region29: #{tpu_custom_call.1} parent=11 // pred_check
          %p292 = pneg %p200
        $region30: #{tpu_custom_call.1} parent=11 // pred_check_branch
          %294 = sbr.rel (%p292) target = $region32
        $region31: #{tpu_custom_call.1} parent=11 // pred_region
          %s296 = ssub.s32 512, 512
          %297 = vsyncadd [#allocation9], %s296
          %s298 = sshll.u32 [#allocation8], 4
          %s299 = int_to_ptr.vmem [resolvable:$true] %s298
          %304 = dma.hbm_to_vmem [thread:$0]  %s6, 512, %s299, [#allocation9], 128, 128, 8
        $region32: #{tpu_custom_call.1} parent=11 // pred_fallthru
          _
        // Predicated region
        $region33: #{tpu_custom_call.1} parent=11 // pred_check
          %p305 = pneg %p221
        $region34: #{tpu_custom_call.1} parent=11 // pred_check_branch
          %307 = sbr.rel (%p305) target = $region36
        $region35: #{tpu_custom_call.1} parent=11 // pred_region
          _
        $region36: #{tpu_custom_call.1} parent=11 // pred_fallthru
          _
      $region12: #{tpu_custom_call.1} parent=5 // pred_fallthru
        _
      %p308 = scmp.lt.s32.totalorder %s24, 2
      // Predicated region
      $region37: #{tpu_custom_call.1} parent=5 // pred_check
        %p309 = pneg %p308
      $region38: #{tpu_custom_call.1} parent=5 // pred_check_branch
        %311 = sbr.rel (%p309) target = $region40
      $region39: #{tpu_custom_call.1} parent=5 // pred_region
        // Predicated region
        $region41: #{tpu_custom_call.1} parent=39 // pred_check
          %p312 = pneg %p82
        $region42: #{tpu_custom_call.1} parent=39 // pred_check_branch
          %314 = sbr.rel (%p312) target = $region44
        $region43: #{tpu_custom_call.1} parent=39 // pred_region
          %s315 = sand.u32 %s72, 1
          %s316 = scalar_lea.sflag [#allocation3], %s315
          %s317 = sand.u32 %s72, 1
          %s318 = smul.addr %s317, 8
          %s319 = scalar_lea.vmem [#allocation2], %s318
          %s321 = ssub.s32 128, 128
          %322 = vsyncadd %s316, %s321
          %s323 = smul.addr %s31, 128
          %s324 = scalar_lea.hbm %s1, %s323
          %s326 = sshll.u32 %s319, 4
          %s327 = int_to_ptr.vmem [resolvable:$true] %s326
          %329 = dma.hbm_to_vmem [thread:$0]  %s324, 128, %s327, %s316
        $region44: #{tpu_custom_call.1} parent=39 // pred_fallthru
          _
        // Predicated region
        $region45: #{tpu_custom_call.1} parent=39 // pred_check
          %p330 = pneg %p110
        $region46: #{tpu_custom_call.1} parent=39 // pred_check_branch
          %332 = sbr.rel (%p330) target = $region48
        $region47: #{tpu_custom_call.1} parent=39 // pred_region
          %s333 = sand.u32 %s24, 1
          %s334 = scalar_lea.sflag [#allocation6], %s333
          %s335 = sand.u32 %s100, 1
          %s336 = smul.addr %s335, 16
          %s337 = scalar_lea.vmem [#allocation5], %s336
          %s338 = smul.u32 2, %s32
          %s340 = ssub.s32 256, 256
          %341 = vsyncadd %s334, %s340
          %s342 = smul.addr %s31, 2
          %s343 = sadd.s32 %s338, %s342
          %s344 = smul.addr %s343, 128
          %s345 = scalar_lea.hbm %s2, %s344
          %s346 = sshll.u32 %s337, 4
          %s347 = int_to_ptr.vmem [resolvable:$true] %s346
          %352 = dma.hbm_to_vmem [thread:$0]  %s345, 256, %s347, %s334, 128, 128, 8
        $region48: #{tpu_custom_call.1} parent=39 // pred_fallthru
          _
      $region40: #{tpu_custom_call.1} parent=5 // pred_fallthru
        _
      %p353 = scmp.le.s32.totalorder 1, %s24
      %p354 = scmp.lt.s32.totalorder %s24, 3
      %p355 = pnand %p353, %p354
      %p356 = pneg %p355
      // Predicated region
      $region49: #{tpu_custom_call.1} parent=5 // pred_check
        _
      $region50: #{tpu_custom_call.1} parent=5 // pred_check_branch
        %358 = sbr.rel (%p355) target = $region52
      $region51: #{tpu_custom_call.1} parent=5 // pred_region
        %s359 = ssub.s32 %s24, 1
        %s360 = sand.u32 %s75, 1
        %s361 = scalar_lea.sflag [#allocation3], %s360
        %s362 = sand.u32 %s75, 1
        %s363 = smul.addr %s362, 8
        %s364 = scalar_lea.vmem [#allocation2], %s363
        // Predicated region
        $region53: #{tpu_custom_call.1} parent=51 // pred_check
          %p365 = pneg %p88
        $region54: #{tpu_custom_call.1} parent=51 // pred_check_branch
          %367 = sbr.rel (%p365) target = $region56
        $region55: #{tpu_custom_call.1} parent=51 // pred_region
          %368 = dma.done %s361, 128
        $region56: #{tpu_custom_call.1} parent=51 // pred_fallthru
          _
        %s369 = sand.u32 %s29, 1
        %s370 = scalar_lea.sflag [#allocation6], %s369
        %s371 = sand.u32 %s103, 1
        %s372 = smul.addr %s371, 16
        %s373 = scalar_lea.vmem [#allocation5], %s372
        // Predicated region
        $region57: #{tpu_custom_call.1} parent=51 // pred_check
          %p374 = pneg %p116
        $region58: #{tpu_custom_call.1} parent=51 // pred_check_branch
          %376 = sbr.rel (%p374) target = $region60
        $region59: #{tpu_custom_call.1} parent=51 // pred_region
          %377 = dma.done %s370, 256
        $region60: #{tpu_custom_call.1} parent=51 // pred_fallthru
          _
        // Predicated region
        $region61: #{tpu_custom_call.1} parent=51 // pred_check
          %p378 = pneg %p137
        $region62: #{tpu_custom_call.1} parent=51 // pred_check_branch
          %380 = sbr.rel (%p378) target = $region64
        $region63: #{tpu_custom_call.1} parent=51 // pred_region
          %381 = dma.done [#allocation6], 512
        $region64: #{tpu_custom_call.1} parent=51 // pred_fallthru
          _
        // Predicated region
        $region65: #{tpu_custom_call.1} parent=51 // pred_check
          %p382 = pneg %p200
        $region66: #{tpu_custom_call.1} parent=51 // pred_check_branch
          %384 = sbr.rel (%p382) target = $region68
        $region67: #{tpu_custom_call.1} parent=51 // pred_region
          %385 = dma.done [#allocation9], 512
        $region68: #{tpu_custom_call.1} parent=51 // pred_fallthru
          _
        %s386 = smul.u32 2, %s34
        %p387 = scmp.lt.s32.totalorder %s386, 1
        %s388 = scalar_select %p387, %s386, 1
        %s389 = smul.addr %s388, 8
        %s390 = scalar_lea.vmem %s0, %s389
        %p391 = pneg %p62
        %p392 = pneg %p59
        %s393 = sand.u32 %s75, 1
        %s394 = scalar_lea.sflag [#allocation3], %s393
        %s395 = sand.u32 %s75, 1
        %s396 = smul.addr %s395, 8
        %s397 = scalar_lea.vmem [#allocation2], %s396
        %p398 = pneg %p88
        %p399 = pneg %p85
        %s400 = sand.u32 %s29, 1
        %s401 = scalar_lea.sflag [#allocation6], %s400
        %s402 = sand.u32 %s103, 1
        %s403 = smul.addr %s402, 16
        %s404 = scalar_lea.vmem [#allocation5], %s403
        %p405 = pneg %p116
        %p406 = pneg %p113
        %p407 = pneg %p137
        %p408 = pneg %p134
        %p409 = pneg %p158
        %p410 = pneg %p155
        %p411 = pneg %p179
        %p412 = pneg %p176
        %p413 = pneg %p200
        %p414 = pneg %p197
        %p415 = pneg %p221
        %p416 = pneg %p218
        %p417 = pneg %p249
        %p418 = pneg %p246
        %s419 = sand.u32 %s236, 1
        %s420 = scalar_lea.sflag [#allocation4], %s419
        %s421 = sand.u32 %s236, 1
        %s422 = smul.addr %s421, 16
        %s423 = scalar_lea.vmem [#allocation10], %s422
        %s424 = smul.u32 2, %s34
        %p425 = scmp.lt.s32.totalorder %s424, 1
        %s426 = scalar_select %p425, %s424, 1
        %s427 = smul.addr %s426, 8
        %s428 = scalar_lea.vmem %s0, %s427
        %s429 = smul.u32 2, %s34
        %s430 = smul.u32 2, %s34
        %s431 = smul.u32 2, %s34
        %v432 = vld [vmem:[%s428] sm:$0xff]
        %v433 = vld [vmem:[%s428 + $0x8] sm:$0xff]
        %v434 = vld [vmem:[%s364] sm:$0xff]
        %vm435 = vcmask 64512
        %v437 = vsel %vm435, %v432, 0
        %v440 = vsel %vm435, %v433, 0
        %442 = vmatprep.subr.mxu0 0.0
        %443 = vmatpush1.msra.mxu0 0.0
        %444 = vmatprep.subr.mxu0 0.0
        %445 = vmatpush1.msra.mxu0 0.0
        %446 = vmatprep.subr.mxu0 0.0
        %447 = vmatpush1.msra.mxu0 0.0
        %448 = vmatprep.subr.mxu0 0.0
        %449 = vmatpush1.msra.mxu0 0.0
        %450 = vmatprep.subr.mxu0 0.0
        %451 = vmatpush1.msra.mxu0 0.0
        %452 = vmatprep.subr.mxu0 0.0
        %453 = vmatpush1.msra.mxu0 0.0
        %454 = vmatprep.subr.mxu0 0.0
        %455 = vmatpush1.msra.mxu0 0.0
        %456 = vmatprep.subr.mxu0 0.0
        %457 = vmatpush1.msra.mxu0 0.0
        %458 = vmatprep.subr.mxu0 0.0
        %459 = vmatpush1.msra.mxu0 0.0
        %460 = vmatprep.subr.mxu0 0.0
        %461 = vmatpush1.msra.mxu0 0.0
        %462 = vmatprep.subr.mxu0 0.0
        %463 = vmatpush1.msra.mxu0 0.0
        %464 = vmatprep.subr.mxu0 0.0
        %465 = vmatpush1.msra.mxu0 0.0
        %466 = vmatprep.subr.mxu0 0.0
        %467 = vmatpush1.msra.mxu0 0.0
        %468 = vmatprep.subr.mxu0 0.0
        %469 = vmatpush1.msra.mxu0 0.0
        %470 = vmatprep.subr.mxu0 0.0
        %471 = vmatpush1.msra.mxu0 0.0
        %472 = vmatprep.subr.mxu0 0.0
        %473 = vmatpush1.msra.mxu0 %v434
        %474 = vmatprep.subr.mxu0 0.0
        %475 = vmatpush2.msra.mxu0 0.0
        %476 = vmatprep.subr.mxu0 0.0
        %477 = vmatpush2.msra.mxu0 0.0
        %478 = vmatprep.subr.mxu0 0.0
        %479 = vmatpush2.msra.mxu0 0.0
        %480 = vmatprep.subr.mxu0 0.0
        %481 = vmatpush2.msra.mxu0 0.0
        %482 = vmatprep.subr.mxu0 0.0
        %483 = vmatpush2.msra.mxu0 0.0
        %484 = vmatprep.subr.mxu0 0.0
        %485 = vmatpush2.msra.mxu0 0.0
        %486 = vmatprep.subr.mxu0 0.0
        %487 = vmatpush2.msra.mxu0 0.0
        %488 = vmatprep.subr.mxu0 0.0
        %489 = vmatpush2.msra.mxu0 0.0
        %490 = vmatprep.subr.mxu0 0.0
        %491 = vmatpush2.msra.mxu0 0.0
        %492 = vmatprep.subr.mxu0 0.0
        %493 = vmatpush2.msra.mxu0 0.0
        %494 = vmatprep.subr.mxu0 0.0
        %495 = vmatpush2.msra.mxu0 0.0
        %496 = vmatprep.subr.mxu0 0.0
        %497 = vmatpush2.msra.mxu0 0.0
        %498 = vmatprep.subr.mxu0 0.0
        %499 = vmatpush2.msra.mxu0 0.0
        %500 = vmatprep.subr.mxu0 0.0
        %501 = vmatpush2.msra.mxu0 0.0
        %502 = vmatprep.subr.mxu0 0.0
        %503 = vmatpush2.msra.mxu0 0.0
        %504 = vmatprep.subr.mxu0 0.0
        %505 = vmatpush2.msra.mxu0 0.0
        %506 = vmatprep.mubr.f32.mxu0 0.0
        %507 = vmatmul.mubr.f32.gmra.mxu0 %v437
        %v508 = vpop.f32.mrf.mxu0
        %v509 = vadd.f32 0.0, %v508
        %v510 = vpop.f32.mrf.mxu0
        %511 = vmatprep.mubr.f32.mxu0 0.0
        %512 = vmatmul.mubr.f32.gmra.mxu0 %v440
        %v513 = vpop.f32.mrf.mxu0
        %v514 = vadd.f32 0.0, %v513
        %v515 = vpop.f32.mrf.mxu0
        %516 = vdwg.mxu0
        %v517 = vld [vmem:[#allocation7] sm:$0xff]
        %v518 = vld [vmem:[#allocation7 + $0x8] sm:$0xff]
        %v519 = vld [vmem:[#allocation7 + $0x10] sm:$0xff]
        %v520 = vld [vmem:[#allocation7 + $0x18] sm:$0xff]
        %v521 = vld [vmem:[%s4] sm:$0x1]
        %v523 = vlaneseq
        %v524 = vshrl.u32 %v523, 7
        %v525 = vsub.s32 0, %v524
        %v526 = vrot.slane %v521, %v525
        %vm528 = vcmask 261120
        %v530 = vsel %vm528, %v509, 0
        %v533 = vsel %vm528, %v514, 0
        %535 = vmatprep.subr.mxu0 0.0
        %536 = vmatpush1.msra.mxu0 0.0
        %537 = vmatprep.subr.mxu0 0.0
        %538 = vmatpush1.msra.mxu0 0.0
        %539 = vmatprep.subr.mxu0 0.0
        %540 = vmatpush1.msra.mxu0 0.0
        %541 = vmatprep.subr.mxu0 0.0
        %542 = vmatpush1.msra.mxu0 0.0
        %543 = vmatprep.subr.mxu0 0.0
        %544 = vmatpush1.msra.mxu0 0.0
        %545 = vmatprep.subr.mxu0 0.0
        %546 = vmatpush1.msra.mxu0 0.0
        %547 = vmatprep.subr.mxu0 0.0
        %548 = vmatpush1.msra.mxu0 0.0
        %549 = vmatprep.subr.mxu0 0.0
        %550 = vmatpush1.msra.mxu0 0.0
        %551 = vmatprep.subr.mxu0 0.0
        %552 = vmatpush1.msra.mxu0 0.0
        %553 = vmatprep.subr.mxu0 0.0
        %554 = vmatpush1.msra.mxu0 0.0
        %555 = vmatprep.subr.mxu0 0.0
        %556 = vmatpush1.msra.mxu0 0.0
        %557 = vmatprep.subr.mxu0 0.0
        %558 = vmatpush1.msra.mxu0 0.0
        %559 = vmatprep.subr.mxu0 0.0
        %560 = vmatpush1.msra.mxu0 %v520
        %561 = vmatprep.subr.mxu0 0.0
        %562 = vmatpush1.msra.mxu0 %v519
        %563 = vmatprep.subr.mxu0 0.0
        %564 = vmatpush1.msra.mxu0 %v518
        %565 = vmatprep.subr.mxu0 0.0
        %566 = vmatpush1.msra.mxu0 %v517
        %567 = vmatprep.subr.mxu0 0.0
        %568 = vmatpush2.msra.mxu0 0.0
        %569 = vmatprep.subr.mxu0 0.0
        %570 = vmatpush2.msra.mxu0 0.0
        %571 = vmatprep.subr.mxu0 0.0
        %572 = vmatpush2.msra.mxu0 0.0
        %573 = vmatprep.subr.mxu0 0.0
        %574 = vmatpush2.msra.mxu0 0.0
        %575 = vmatprep.subr.mxu0 0.0
        %576 = vmatpush2.msra.mxu0 0.0
        %577 = vmatprep.subr.mxu0 0.0
        %578 = vmatpush2.msra.mxu0 0.0
        %579 = vmatprep.subr.mxu0 0.0
        %580 = vmatpush2.msra.mxu0 0.0
        %581 = vmatprep.subr.mxu0 0.0
        %582 = vmatpush2.msra.mxu0 0.0
        %583 = vmatprep.subr.mxu0 0.0
        %584 = vmatpush2.msra.mxu0 0.0
        %585 = vmatprep.subr.mxu0 0.0
        %586 = vmatpush2.msra.mxu0 0.0
        %587 = vmatprep.subr.mxu0 0.0
        %588 = vmatpush2.msra.mxu0 0.0
        %589 = vmatprep.subr.mxu0 0.0
        %590 = vmatpush2.msra.mxu0 0.0
        %591 = vmatprep.subr.mxu0 0.0
        %592 = vmatpush2.msra.mxu0 0.0
        %593 = vmatprep.subr.mxu0 0.0
        %594 = vmatpush2.msra.mxu0 0.0
        %595 = vmatprep.subr.mxu0 0.0
        %596 = vmatpush2.msra.mxu0 0.0
        %597 = vmatprep.subr.mxu0 0.0
        %598 = vmatpush2.msra.mxu0 0.0
        %599 = vmatprep.mubr.f32.mxu0 0.0
        %600 = vmatmul.mubr.f32.gmra.mxu0 %v530
        %v601 = vpop.f32.mrf.mxu0
        %v602 = vadd.f32 %v526, %v601
        %v603 = vpop.f32.mrf.mxu0
        %604 = vmatprep.mubr.f32.mxu0 0.0
        %605 = vmatmul.mubr.f32.gmra.mxu0 %v533
        %v606 = vpop.f32.mrf.mxu0
        %v607 = vadd.f32 %v526, %v606
        %v608 = vpop.f32.mrf.mxu0
        %609 = vdwg.mxu0
        %v610 = vmax.f32 %v602, 0.0
        %v611 = vmax.f32 %v607, 0.0
        %v612 = vld [vmem:[%s5] sm:$0xff]
        %v613 = vld [vmem:[%s5 + $0x8] sm:$0xff]
        %v614 = vld [vmem:[%s5 + $0x10] sm:$0xff]
        %v615 = vld [vmem:[%s5 + $0x18] sm:$0xff]
        %v616 = vld [vmem:[%s373] sm:$0xff]
        %v617 = vld [vmem:[%s373 + $0x8] sm:$0xff]
        %v618 = vld [vmem:[#allocation8] sm:$0xff]
        %v619 = vld [vmem:[#allocation8 + $0x8] sm:$0xff]
        %v620 = vld [vmem:[#allocation8 + $0x10] sm:$0xff]
        %v621 = vld [vmem:[#allocation8 + $0x18] sm:$0xff]
        %v623 = vsel %vm528, %v616, 0
        %v626 = vsel %vm528, %v617, 0
        %628 = vmatprep.subr.mxu0 0.0
        %629 = vmatpush1.msra.mxu0 0.0
        %630 = vmatprep.subr.mxu0 0.0
        %631 = vmatpush1.msra.mxu0 0.0
        %632 = vmatprep.subr.mxu0 0.0
        %633 = vmatpush1.msra.mxu0 0.0
        %634 = vmatprep.subr.mxu0 0.0
        %635 = vmatpush1.msra.mxu0 0.0
        %636 = vmatprep.subr.mxu0 0.0
        %637 = vmatpush1.msra.mxu0 0.0
        %638 = vmatprep.subr.mxu0 0.0
        %639 = vmatpush1.msra.mxu0 0.0
        %640 = vmatprep.subr.mxu0 0.0
        %641 = vmatpush1.msra.mxu0 0.0
        %642 = vmatprep.subr.mxu0 0.0
        %643 = vmatpush1.msra.mxu0 0.0
        %644 = vmatprep.subr.mxu0 0.0
        %645 = vmatpush1.msra.mxu0 0.0
        %646 = vmatprep.subr.mxu0 0.0
        %647 = vmatpush1.msra.mxu0 0.0
        %648 = vmatprep.subr.mxu0 0.0
        %649 = vmatpush1.msra.mxu0 0.0
        %650 = vmatprep.subr.mxu0 0.0
        %651 = vmatpush1.msra.mxu0 0.0
        %652 = vmatprep.subr.mxu0 0.0
        %653 = vmatpush1.msra.mxu0 %v621
        %654 = vmatprep.subr.mxu0 0.0
        %655 = vmatpush1.msra.mxu0 %v620
        %656 = vmatprep.subr.mxu0 0.0
        %657 = vmatpush1.msra.mxu0 %v619
        %658 = vmatprep.subr.mxu0 0.0
        %659 = vmatpush1.msra.mxu0 %v618
        %660 = vmatprep.subr.mxu0 0.0
        %661 = vmatpush2.msra.mxu0 0.0
        %662 = vmatprep.subr.mxu0 0.0
        %663 = vmatpush2.msra.mxu0 0.0
        %664 = vmatprep.subr.mxu0 0.0
        %665 = vmatpush2.msra.mxu0 0.0
        %666 = vmatprep.subr.mxu0 0.0
        %667 = vmatpush2.msra.mxu0 0.0
        %668 = vmatprep.subr.mxu0 0.0
        %669 = vmatpush2.msra.mxu0 0.0
        %670 = vmatprep.subr.mxu0 0.0
        %671 = vmatpush2.msra.mxu0 0.0
        %672 = vmatprep.subr.mxu0 0.0
        %673 = vmatpush2.msra.mxu0 0.0
        %674 = vmatprep.subr.mxu0 0.0
        %675 = vmatpush2.msra.mxu0 0.0
        %676 = vmatprep.subr.mxu0 0.0
        %677 = vmatpush2.msra.mxu0 0.0
        %678 = vmatprep.subr.mxu0 0.0
        %679 = vmatpush2.msra.mxu0 0.0
        %680 = vmatprep.subr.mxu0 0.0
        %681 = vmatpush2.msra.mxu0 0.0
        %682 = vmatprep.subr.mxu0 0.0
        %683 = vmatpush2.msra.mxu0 0.0
        %684 = vmatprep.subr.mxu0 0.0
        %685 = vmatpush2.msra.mxu0 0.0
        %686 = vmatprep.subr.mxu0 0.0
        %687 = vmatpush2.msra.mxu0 0.0
        %688 = vmatprep.subr.mxu0 0.0
        %689 = vmatpush2.msra.mxu0 0.0
        %690 = vmatprep.subr.mxu0 0.0
        %691 = vmatpush2.msra.mxu0 0.0
        %692 = vmatprep.mubr.f32.mxu0 0.0
        %693 = vmatmul.mubr.f32.gmra.mxu0 %v623
        %v694 = vpop.f32.mrf.mxu0
        %v695 = vadd.f32 0.0, %v694
        %v696 = vpop.f32.mrf.mxu0
        %697 = vmatprep.mubr.f32.mxu0 0.0
        %698 = vmatmul.mubr.f32.gmra.mxu0 %v626
        %v699 = vpop.f32.mrf.mxu0
        %v700 = vadd.f32 0.0, %v699
        %v701 = vpop.f32.mrf.mxu0
        %702 = vdwg.mxu0
        %v704 = vsel %vm528, %v610, 0
        %v707 = vsel %vm528, %v611, 0
        %709 = vmatprep.subr.mxu0 0.0
        %710 = vmatpush1.msra.mxu0 0.0
        %711 = vmatprep.subr.mxu0 0.0
        %712 = vmatpush1.msra.mxu0 0.0
        %713 = vmatprep.subr.mxu0 0.0
        %714 = vmatpush1.msra.mxu0 0.0
        %715 = vmatprep.subr.mxu0 0.0
        %716 = vmatpush1.msra.mxu0 0.0
        %717 = vmatprep.subr.mxu0 0.0
        %718 = vmatpush1.msra.mxu0 0.0
        %719 = vmatprep.subr.mxu0 0.0
        %720 = vmatpush1.msra.mxu0 0.0
        %721 = vmatprep.subr.mxu0 0.0
        %722 = vmatpush1.msra.mxu0 0.0
        %723 = vmatprep.subr.mxu0 0.0
        %724 = vmatpush1.msra.mxu0 0.0
        %725 = vmatprep.subr.mxu0 0.0
        %726 = vmatpush1.msra.mxu0 0.0
        %727 = vmatprep.subr.mxu0 0.0
        %728 = vmatpush1.msra.mxu0 0.0
        %729 = vmatprep.subr.mxu0 0.0
        %730 = vmatpush1.msra.mxu0 0.0
        %731 = vmatprep.subr.mxu0 0.0
        %732 = vmatpush1.msra.mxu0 0.0
        %733 = vmatprep.subr.mxu0 0.0
        %734 = vmatpush1.msra.mxu0 %v615
        %735 = vmatprep.subr.mxu0 0.0
        %736 = vmatpush1.msra.mxu0 %v614
        %737 = vmatprep.subr.mxu0 0.0
        %738 = vmatpush1.msra.mxu0 %v613
        %739 = vmatprep.subr.mxu0 0.0
        %740 = vmatpush1.msra.mxu0 %v612
        %741 = vmatprep.subr.mxu0 0.0
        %742 = vmatpush2.msra.mxu0 0.0
        %743 = vmatprep.subr.mxu0 0.0
        %744 = vmatpush2.msra.mxu0 0.0
        %745 = vmatprep.subr.mxu0 0.0
        %746 = vmatpush2.msra.mxu0 0.0
        %747 = vmatprep.subr.mxu0 0.0
        %748 = vmatpush2.msra.mxu0 0.0
        %749 = vmatprep.subr.mxu0 0.0
        %750 = vmatpush2.msra.mxu0 0.0
        %751 = vmatprep.subr.mxu0 0.0
        %752 = vmatpush2.msra.mxu0 0.0
        %753 = vmatprep.subr.mxu0 0.0
        %754 = vmatpush2.msra.mxu0 0.0
        %755 = vmatprep.subr.mxu0 0.0
        %756 = vmatpush2.msra.mxu0 0.0
        %757 = vmatprep.subr.mxu0 0.0
        %758 = vmatpush2.msra.mxu0 0.0
        %759 = vmatprep.subr.mxu0 0.0
        %760 = vmatpush2.msra.mxu0 0.0
        %761 = vmatprep.subr.mxu0 0.0
        %762 = vmatpush2.msra.mxu0 0.0
        %763 = vmatprep.subr.mxu0 0.0
        %764 = vmatpush2.msra.mxu0 0.0
        %765 = vmatprep.subr.mxu0 0.0
        %766 = vmatpush2.msra.mxu0 0.0
        %767 = vmatprep.subr.mxu0 0.0
        %768 = vmatpush2.msra.mxu0 0.0
        %769 = vmatprep.subr.mxu0 0.0
        %770 = vmatpush2.msra.mxu0 0.0
        %771 = vmatprep.subr.mxu0 0.0
        %772 = vmatpush2.msra.mxu0 0.0
        %773 = vmatprep.mubr.f32.mxu0 0.0
        %774 = vmatmul.mubr.f32.gmra.mxu0 %v704
        %v775 = vpop.f32.mrf.mxu0
        %v776 = vadd.f32 %v695, %v775
        %v777 = vpop.f32.mrf.mxu0
        %778 = vmatprep.mubr.f32.mxu0 0.0
        %779 = vmatmul.mubr.f32.gmra.mxu0 %v707
        %v780 = vpop.f32.mrf.mxu0
        %v781 = vadd.f32 %v700, %v780
        %v782 = vpop.f32.mrf.mxu0
        %783 = vdwg.mxu0
        %v784 = vld [vmem:[%s7] sm:$0x1]
        %v786 = vlaneseq
        %v787 = vshrl.u32 %v786, 7
        %v788 = vsub.s32 0, %v787
        %v789 = vrot.slane %v784, %v788
        %v791 = vadd.f32 %v776, %v789
        %v792 = vadd.f32 %v781, %v789
        %v793 = vmax.f32 %v791, 0.0
        %v794 = vmax.f32 %v792, 0.0
        %795 = vst [vmem:[%s423] sm:$0xff] %v793
        %796 = vst [vmem:[%s423 + $0x8] sm:$0xff] %v794
        %s797 = sand.u32 %s236, 1
        %s798 = scalar_lea.sflag [#allocation4], %s797
        %s799 = sand.u32 %s236, 1
        %s800 = smul.addr %s799, 16
        %s801 = scalar_lea.vmem [#allocation10], %s800
        // Predicated region
        $region69: #{tpu_custom_call.1} parent=51 // pred_check
          %p802 = pneg %p246
        $region70: #{tpu_custom_call.1} parent=51 // pred_check_branch
          %804 = sbr.rel (%p802) target = $region72
        $region71: #{tpu_custom_call.1} parent=51 // pred_region
          %s805 = smul.u32 2, %s34
          %s807 = ssub.s32 256, 256
          %808 = vsyncadd %s798, %s807
          %s809 = smul.addr %s33, 2
          %s810 = sadd.s32 %s805, %s809
          %s811 = smul.addr %s810, 128
          %s812 = scalar_lea.hbm %s8, %s811
          %s813 = sshll.u32 %s801, 4
          %s814 = int_to_ptr.vmem [resolvable:$true] %s813
          %819 = dma.vmem_to_hbm [thread:$0]  %s814, 256, %s812, %s798, 128, 128, 8
        $region72: #{tpu_custom_call.1} parent=51 // pred_fallthru
          _
      $region52: #{tpu_custom_call.1} parent=5 // pred_fallthru
        _
      %p820 = scmp.le.s32.totalorder 2, %s24
      // Predicated region
      $region73: #{tpu_custom_call.1} parent=5 // pred_check
        %p821 = pneg %p820
      $region74: #{tpu_custom_call.1} parent=5 // pred_check_branch
        %823 = sbr.rel (%p821) target = $region76
      $region75: #{tpu_custom_call.1} parent=5 // pred_region
        %s824 = ssub.s32 %s24, 2
        // Predicated region
        $region77: #{tpu_custom_call.1} parent=75 // pred_check
          %p825 = pneg %p252
        $region78: #{tpu_custom_call.1} parent=75 // pred_check_branch
          %827 = sbr.rel (%p825) target = $region80
        $region79: #{tpu_custom_call.1} parent=75 // pred_region
          %s828 = sand.u32 %s237, 1
          %s829 = scalar_lea.sflag [#allocation4], %s828
          %s830 = sand.u32 %s237, 1
          %s831 = smul.addr %s830, 16
          %s832 = scalar_lea.vmem [#allocation10], %s831
          %833 = dma.done %s829, 256
        $region80: #{tpu_custom_call.1} parent=75 // pred_fallthru
          _
      $region76: #{tpu_custom_call.1} parent=5 // pred_fallthru
        _
    $region6: #{tpu_custom_call.1} parent=1 // loop_footer
      %s28 = sadd.s32 1, %s24
    $region7: #{tpu_custom_call.1} parent=1 // loop_footer_branch
      %23 = sbr.rel target = $region3
    $region8: #{tpu_custom_call.1} parent=1 // loop_exit
      _
    %834 = vsyncpa [#allocation3], 1
    %s835 = scalar_lea.sflag [#allocation3], 1
    %836 = vsyncpa %s835, 1
    %837 = vsyncpa [#allocation6], 1
    %s838 = scalar_lea.sflag [#allocation6], 1
    %839 = vsyncpa %s838, 1
    %840 = vsyncpa [#allocation9], 1
    %841 = vsyncpa [#allocation4], 1
    %s842 = scalar_lea.sflag [#allocation4], 1
    %843 = vsyncpa %s842, 1

</llo_original>
